<compile_context>
chip_gen: v5e
topology: v5e:2x2
jax: 0.10.0
libtpu: 0.0.40
codegen_flags: <defaults>
</compile_context>

<pallas_src>
import functools

import jax
import jax.numpy as jnp
from jax import lax
from jax.experimental import pallas as pl
from jax.experimental.pallas import tpu as pltpu


def _round_up(x, m):
    return (x + m - 1) // m * m


# ---------------------------------------------------------------------------
# Time-parallel dense projection: y = x @ w + b
# Grid order is chosen so the LARGER operand is streamed from HBM only once.
# ---------------------------------------------------------------------------
def _dense_kernel(x_ref, w_ref, b_ref, o_ref):
    acc = jnp.dot(x_ref[...], w_ref[...], preferred_element_type=jnp.float32)
    o_ref[...] = (acc + b_ref[...]).astype(o_ref.dtype)


def _dense(x, w, b, *, out_dtype=jnp.float32, m_blk_max=512, n_blk_max=1024):
    """x: (M, K), w: (K, N) (bf16 recommended), b: (1, N) f32 -> (M, N)."""
    M, K = x.shape
    _, N = w.shape
    m_blk = min(m_blk_max, _round_up(M, 8))
    n_blk = min(n_blk_max, _round_up(N, 128))
    Mp = _round_up(M, m_blk)
    Np = _round_up(N, n_blk)
    if Mp != M:
        x = jnp.pad(x, ((0, Mp - M), (0, 0)))
    if Np != N:
        w = jnp.pad(w, ((0, 0), (0, Np - N)))
        b = jnp.pad(b, ((0, 0), (0, Np - N)))
    gm, gn = Mp // m_blk, Np // n_blk

    # Keep the bigger operand resident across the inner grid sweep so it is
    # read from HBM exactly once (fixes W_out re-streaming per M-tile).
    weight_resident = w.nbytes >= x.nbytes
    if weight_resident:
        grid = (gn, gm)                           # j outer, i inner
        x_map = lambda j, i: (i, 0)
        w_map = lambda j, i: (0, j)
        b_map = lambda j, i: (0, j)
        o_map = lambda j, i: (i, j)
    else:
        grid = (gm, gn)                           # i outer, j inner
        x_map = lambda i, j: (i, 0)
        w_map = lambda i, j: (0, j)
        b_map = lambda i, j: (0, j)
        o_map = lambda i, j: (i, j)

    needed = 2 * (m_blk * K * x.dtype.itemsize
                  + K * n_blk * w.dtype.itemsize
                  + n_blk * 4
                  + m_blk * n_blk * jnp.dtype(out_dtype).itemsize)
    vmem_limit = int(min(max(needed + (4 << 20), 16 << 20), 64 << 20))

    out = pl.pallas_call(
        _dense_kernel,
        out_shape=jax.ShapeDtypeStruct((Mp, Np), out_dtype),
        grid_spec=pltpu.PrefetchScalarGridSpec(
            num_scalar_prefetch=0,
            grid=grid,
            in_specs=[
                pl.BlockSpec((m_blk, K), x_map),
                pl.BlockSpec((K, n_blk), w_map),
                pl.BlockSpec((1, n_blk), b_map),
            ],
            out_specs=pl.BlockSpec((m_blk, n_blk), o_map),
        ),
        compiler_params=pltpu.CompilerParams(
            dimension_semantics=("parallel", "parallel"),
            vmem_limit_bytes=vmem_limit),
    )(x, w, b)
    if Mp != M or Np != N:
        out = out[:M, :N]
    return out


# ---------------------------------------------------------------------------
# Sequential 2-layer LSTM recurrence (input projection precomputed).
# ---------------------------------------------------------------------------
def _lstm_seq_kernel(xg0_ref, whh0_ref, wih1_ref, whh1_ref, b1_ref,   # inputs
                     h1out_ref,                                       # output
                     h0_ref, c0_ref, h1_ref, c1_ref,                  # scratch
                     *, hidden_pad, batch_pad, t_blk, unroll):
    Hp = hidden_pad
    tb = pl.program_id(0)

    # Zero the recurrent state at the first time block.
    @pl.when(tb == 0)
    def _():
        zero = jnp.zeros((batch_pad, Hp), jnp.float32)
        h0_ref[...] = zero
        c0_ref[...] = zero
        h1_ref[...] = zero
        c1_ref[...] = zero

    # Hoisted per-block loads / broadcasts (not repeated inside the step loop).
    whh0 = whh0_ref[...]                                     # (Hp, 4Hp) bf16
    wih1 = wih1_ref[...]                                     # (Hp, 4Hp) bf16
    whh1 = whh1_ref[...]                                     # (Hp, 4Hp) bf16
    b1 = jnp.broadcast_to(b1_ref[...], (batch_pad, 4 * Hp))  # (Bp, 4Hp) f32

    def gate_update(gates, c):
        # PyTorch gate order: i, f, g, o.  Slices are 128-lane aligned.
        # Gate math stays f32 (v5e has no bf16 VPU/EUP).
        i = jax.nn.sigmoid(gates[:, 0 * Hp:1 * Hp])
        f = jax.nn.sigmoid(gates[:, 1 * Hp:2 * Hp])
        g = jnp.tanh(gates[:, 2 * Hp:3 * Hp])
        o = jax.nn.sigmoid(gates[:, 3 * Hp:4 * Hp])
        c_new = f * c + i * g
        return o * jnp.tanh(c_new), c_new

    def step(s, carry):
        h0, c0, h1, c1 = carry
        # Layer 0: input part (x @ W_ih0^T + biases) was precomputed -> xg0.
        g0 = xg0_ref[s] + jnp.dot(h0.astype(jnp.bfloat16), whh0,
                                  preferred_element_type=jnp.float32)
        h0, c0 = gate_update(g0, c0)
        # Layer 1: two dots (no per-step concatenate on the serial path).
        g1 = (jnp.dot(h0.astype(jnp.bfloat16), wih1,
                      preferred_element_type=jnp.float32)
              + jnp.dot(h1.astype(jnp.bfloat16), whh1,
                        preferred_element_type=jnp.float32)
              + b1)
        h1, c1 = gate_update(g1, c1)
        h1out_ref[s] = h1.astype(h1out_ref.dtype)
        return (h0, c0, h1, c1)

    carry = (h0_ref[...], c0_ref[...], h1_ref[...], c1_ref[...])
    h0, c0, h1, c1 = lax.fori_loop(0, t_blk, step, carry, unroll=unroll)
    h0_ref[...] = h0
    c0_ref[...] = c0
    h1_ref[...] = h1
    c1_ref[...] = c1


def _lstm_recurrence(xg0, whh0_T, wih1_T, whh1_T, b1, *, Hp, Bp, t_blk, unroll,
                     single_buffer_weights):
    Lp = xg0.shape[0]
    kernel = functools.partial(_lstm_seq_kernel, hidden_pad=Hp, batch_pad=Bp,
                               t_blk=t_blk, unroll=unroll)
    # Grid-invariant weights: single buffer (index_map is constant, so double
    # buffering is pure VMEM waste — matters for large H on v7x's 64 MiB VMEM).
    wkw = dict(pipeline_mode=pl.Buffered(1)) if single_buffer_weights else {}
    in_specs = [
        pl.BlockSpec((t_blk, Bp, 4 * Hp), lambda tb: (tb, 0, 0)),   # xg0 block
        pl.BlockSpec((Hp, 4 * Hp), lambda tb: (0, 0), **wkw),       # W_hh0^T
        pl.BlockSpec((Hp, 4 * Hp), lambda tb: (0, 0), **wkw),       # W_ih1^T
        pl.BlockSpec((Hp, 4 * Hp), lambda tb: (0, 0), **wkw),       # W_hh1^T
        pl.BlockSpec((1, 4 * Hp), lambda tb: (0, 0), **wkw),        # b1
    ]
    nbuf_w = 1 if single_buffer_weights else 2
    needed = (nbuf_w * (3 * Hp * 4 * Hp * 2 + 4 * Hp * 4)   # bf16 weights + f32 b1
              + 2 * t_blk * Bp * 4 * Hp * 2                 # xg0 (bf16, 2 bufs)
              + 2 * t_blk * Bp * Hp * 2                     # h1 out (bf16, 2 bufs)
              + 4 * Bp * Hp * 4)                            # h/c scratch (f32)
    vmem_limit = int(min(max(needed + (4 << 20), 16 << 20), 64 << 20))

    return pl.pallas_call(
        kernel,
        out_shape=jax.ShapeDtypeStruct((Lp, Bp, Hp), jnp.bfloat16),
        grid_spec=pltpu.PrefetchScalarGridSpec(
            num_scalar_prefetch=0,
            grid=(Lp // t_blk,),
            in_specs=in_specs,
            out_specs=pl.BlockSpec((t_blk, Bp, Hp), lambda tb: (tb, 0, 0)),
            scratch_shapes=[pltpu.VMEM((Bp, Hp), jnp.float32)] * 4,  # h0 c0 h1 c1
        ),
        compiler_params=pltpu.CompilerParams(
            dimension_semantics=("arbitrary",),      # true recurrence: sequential
            vmem_limit_bytes=vmem_limit),
    )(xg0, whh0_T, wih1_T, whh1_T, b1)


# ---------------------------------------------------------------------------
# Full forward pass.
# ---------------------------------------------------------------------------
def text_generation_forward(x, params, *, t_blk=16, unroll=4,
                            input_proj_mode="auto"):
    """x: (seq_len, batch) int32 -> logits (seq_len, batch, vocab) float32."""
    emb_table = params["embedding"]              # (V, E) f32
    V, E = emb_table.shape
    H = params["whh0"].shape[1]
    L, B = x.shape

    Hp = _round_up(H, 128)                       # lane-aligned gate slices
    Bp = _round_up(B, 8)                         # sublane-aligned batch
    Vp = _round_up(V, 128)                       # lane-dense vocab writeback
    t_blk = max(1, min(t_blk, L))
    Lp = _round_up(L, t_blk)
    unroll = max(1, min(unroll, t_blk))
    bf16 = jnp.bfloat16

    # --- weight prep: transpose + per-gate zero padding to Hp, bf16 MXU operands
    def gate_pad_T(w):        # (4H, K) -> (K, 4Hp), gate blocks kept aligned
        K = w.shape[1]
        w4 = jnp.pad(w.reshape(4, H, K), ((0, 0), (0, Hp - H), (0, 0)))
        return w4.reshape(4 * Hp, K).T

    def gate_pad_b(b):        # (4H,) -> (1, 4Hp) f32
        return jnp.pad(b.reshape(4, H), ((0, 0), (0, Hp - H))).reshape(1, 4 * Hp)

    def pad_rows(w):          # (H, N) -> (Hp, N)
        return jnp.pad(w, ((0, Hp - H), (0, 0)))

    wih0_T = gate_pad_T(params["wih0"]).astype(bf16)                 # (E, 4Hp)
    whh0_T = pad_rows(gate_pad_T(params["whh0"])).astype(bf16)       # (Hp, 4Hp)
    b0 = gate_pad_b(params["bih0"] + params["bhh0"])                 # (1, 4Hp) f32
    wih1_T = pad_rows(gate_pad_T(params["wih1"])).astype(bf16)       # (Hp, 4Hp)
    whh1_T = pad_rows(gate_pad_T(params["whh1"])).astype(bf16)       # (Hp, 4Hp)
    b1 = gate_pad_b(params["bih1"] + params["bhh1"])                 # (1, 4Hp) f32
    wout_T = jnp.pad(params["wout"].T,
                     ((0, Hp - H), (0, Vp - V))).astype(bf16)        # (Hp, Vp)
    bout = jnp.pad(params["bout"].reshape(1, V), ((0, 0), (0, Vp - V)))

    # --- (1) input projection (layer-0 biases folded in) --------------------
    if input_proj_mode == "auto":
        input_proj_mode = "table" if V <= Lp * Bp else "dense"
    x_pad = jnp.pad(x, ((0, Lp - L), (0, Bp - B)))   # index 0 is a valid token

    if input_proj_mode == "table":
        # Small vocab: project the embedding table once, then a single gather
        # — no (Lp, Bp, E) activation materialization, no big input matmul.
        table_proj = _dense(emb_table.astype(bf16), wih0_T, b0,
                            out_dtype=bf16)                          # (V, 4Hp)
        xg0 = jnp.take(table_proj, x_pad, axis=0)                    # (Lp, Bp, 4Hp)
    else:
        x_emb = jnp.take(emb_table.astype(bf16), x_pad, axis=0)      # (Lp, Bp, E)
        xg0 = _dense(x_emb.reshape(Lp * Bp, E), wih0_T, b0,
                     out_dtype=bf16).reshape(Lp, Bp, 4 * Hp)

    # --- (2) sequential recurrence over time blocks --------------------------
    try:
        h1_seq = jax.block_until_ready(_lstm_recurrence(
            xg0, whh0_T, wih1_T, whh1_T, b1, Hp=Hp, Bp=Bp, t_blk=t_blk,
            unroll=unroll, single_buffer_weights=True))
    except Exception:
        # Fallback if pl.Buffered(1) is rejected by this jax/Mosaic version.
        h1_seq = _lstm_recurrence(
            xg0, whh0_T, wih1_T, whh1_T, b1, Hp=Hp, Bp=Bp, t_blk=t_blk,
            unroll=unroll, single_buffer_weights=False)

    # --- (3) time-parallel vocab projection (f32 logits for the check) ------
    logits = _dense(h1_seq.reshape(Lp * Bp, Hp), wout_T, bout,
                    out_dtype=jnp.float32)
    logits = logits.reshape(Lp, Bp, Vp)
    if (Lp, Bp, Vp) != (L, B, V):
        # Padded time/batch rows hold garbage (bias-driven); never read.
        logits = logits[:L, :B, :V]
    return logits


# ---------------------------------------------------------------------------
# Pure-JAX f32 reference (matches PyTorch semantics) and parameter init.
# ---------------------------------------------------------------------------
def _reference_forward(x, params):
    emb = jnp.take(params["embedding"], x, axis=0)  # (L, B, E)
    H = params["whh0"].shape[1]

    def cell(x_t, h, c, wih, whh, bih, bhh):
        g = x_t @ wih.T + h @ whh.T + bih + bhh
        i = jax.nn.sigmoid(g[:, :H])
        f = jax.nn.sigmoid(g[:, H:2 * H])
        gg = jnp.tanh(g[:, 2 * H:3 * H])
        o = jax.nn.sigmoid(g[:, 3 * H:])
        c = f * c + i * gg
        return o * jnp.tanh(c), c

    B = x.shape[1]
    h0 = c0 = h1 = c1 = jnp.zeros((B, H), jnp.float32)
    outs = []
    for t in range(x.shape[0]):
        h0, c0 = cell(emb[t], h0, c0, params["wih0"], params["whh0"],
                      params["bih0"], params["bhh0"])
        h1, c1 = cell(h0, h1, c1, params["wih1"], params["whh1"],
                      params["bih1"], params["bhh1"])
        outs.append(h1 @ params["wout"].T + params["bout"])
    return jnp.stack(outs, axis=0)


def init_params(key, vocab, embed, hidden):
    k = 1.0 / jnp.sqrt(hidden)
    keys = jax.random.split(key, 12)
    u = lambda kk, shape: jax.random.uniform(kk, shape, jnp.float32, -k, k)
    return {
        "embedding": jax.random.normal(keys[0], (vocab, embed), jnp.float32),
        "wih0": u(keys[1], (4 * hidden, embed)),
        "whh0": u(keys[2], (4 * hidden, hidden)),
        "bih0": u(keys[3], (4 * hidden,)),
        "bhh0": u(keys[4], (4 * hidden,)),
        "wih1": u(keys[5], (4 * hidden, hidden)),
        "whh1": u(keys[6], (4 * hidden, hidden)),
        "bih1": u(keys[7], (4 * hidden,)),
        "bhh1": u(keys[8], (4 * hidden,)),
        "wout": u(keys[9], (vocab, hidden)),
        "bout": u(keys[10], (vocab,)),
    }


if __name__ == "__main__":
    SEQ, BATCH, VOCAB, EMBED, HIDDEN = 8, 4, 32, 32, 32

    key = jax.random.PRNGKey(0)
    pkey, xkey = jax.random.split(key)
    params = init_params(pkey, VOCAB, EMBED, HIDDEN)
    x = jax.random.randint(xkey, (SEQ, BATCH), 0, VOCAB, dtype=jnp.int32)

    ref = _reference_forward(x, params)

    # Exercise both input-projection paths (table-gather and dense matmul).
    # Tolerance is loose because MXU operands are bf16 (f32 accumulation);
    # expected max error here is ~1e-2.
    for mode in ("table", "dense"):
        logits = jax.block_until_ready(
            text_generation_forward(x, params, input_proj_mode=mode))
        assert logits.shape == (SEQ, BATCH, VOCAB)
        err = float(jnp.max(jnp.abs(logits - ref)))
        assert err < 3e-2, (mode, err)

    print("KERNEL_OK")
</pallas_src>

<mosaic_0001>
module attributes {stable_mosaic.version = 11 : i64} {
  func.func @_dense_kernel(%arg0: i32, %arg1: i32, %arg2: memref<32x32xbf16, #tpu.memory_space<vmem>>, %arg3: memref<32x512xbf16, #tpu.memory_space<vmem>>, %arg4: memref<1x512xf32, #tpu.memory_space<vmem>>, %arg5: memref<32x512xbf16, #tpu.memory_space<vmem>>) attributes {dimension_semantics = [#tpu.dimension_semantics<parallel>, #tpu.dimension_semantics<parallel>], iteration_bounds = array<i64: 1, 1>, scalar_prefetch = 0 : i64, scratch_operands = 0 : i64, tpu.core_type = #tpu.core_type<tc>, window_params = [{transform_indices = @transform_0, window_bounds = array<i64: 32, 32>}, {transform_indices = @transform_1, window_bounds = array<i64: 32, 512>}, {transform_indices = @transform_2, window_bounds = array<i64: 1, 512>}, {transform_indices = @transform_3, window_bounds = array<i64: 32, 512>}]} {
    %c0 = arith.constant 0 : index
    %c0_0 = arith.constant 0 : index
    %0 = vector.load %arg2[%c0, %c0_0] : memref<32x32xbf16, #tpu.memory_space<vmem>>, vector<32x32xbf16>
    %c0_1 = arith.constant 0 : index
    %c0_2 = arith.constant 0 : index
    %1 = vector.load %arg3[%c0_1, %c0_2] : memref<32x512xbf16, #tpu.memory_space<vmem>>, vector<32x512xbf16>
    %cst = arith.constant dense<0.000000e+00> : vector<32x512xf32>
    %2 = tpu.matmul %0, %1, %cst {dimension_numbers = #tpu.dot_dimension_numbers<[1], [0], [0], [1], [0, 0, 1, 1], [], []>} : vector<32x32xbf16>, vector<32x512xbf16>, vector<32x512xf32> -> vector<32x512xf32>
    %c0_3 = arith.constant 0 : index
    %c0_4 = arith.constant 0 : index
    %3 = vector.load %arg4[%c0_3, %c0_4] : memref<1x512xf32, #tpu.memory_space<vmem>>, vector<1x512xf32>
    %4 = vector.broadcast %3 : vector<1x512xf32> to vector<32x512xf32>
    %5 = arith.addf %2, %4 : vector<32x512xf32>
    %6 = arith.truncf %5 : vector<32x512xf32> to vector<32x512xbf16>
    %c0_5 = arith.constant 0 : index
    %c0_6 = arith.constant 0 : index
    %7 = vector.load %arg5[%c0_5, %c0_6] : memref<32x512xbf16, #tpu.memory_space<vmem>>, vector<32x512xbf16>
    tpu.vector_store %arg5[%c0_5, %c0_6], %6 {strides = array<i32>} : memref<32x512xbf16, #tpu.memory_space<vmem>>, vector<32x512xbf16>,
    return
  }
  func.func @transform_0(%arg0: i32, %arg1: i32) -> (i32, i32) {
    %c0_i32 = arith.constant 0 : i32
    %c0_i32_0 = arith.constant 0 : i32
    return %arg1, %c0_i32 : i32, i32
  }
  func.func @transform_1(%arg0: i32, %arg1: i32) -> (i32, i32) {
    %c0_i32 = arith.constant 0 : i32
    %c0_i32_0 = arith.constant 0 : i32
    return %c0_i32, %arg0 : i32, i32
  }
  func.func @transform_2(%arg0: i32, %arg1: i32) -> (i32, i32) {
    %c0_i32 = arith.constant 0 : i32
    %c0_i32_0 = arith.constant 0 : i32
    return %c0_i32, %arg0 : i32, i32
  }
  func.func @transform_3(%arg0: i32, %arg1: i32) -> (i32, i32) {
    %c0_i32 = arith.constant 0 : i32
    return %arg1, %arg0 : i32, i32
  }
}

</mosaic_0001>

<llo_original>
// kernel: tpu_custom_call.1
$region0: #{tpu_custom_call.1}
  #allocation0 [shape = 'u32[]', space=smem, size = 0x4, offset = 0x4, fixed_abs, tag = 'smem constant byte address 0x4 - core index']
  #allocation1 [shape = 'u32[72,128]{1,0:T(1,128)}', space=vmem, size = 0x9000, scoped, tag = 'internal scratch']
  %s0 = inlined_call_operand.hbm [shape: bf16[32,32], index: 0, kind: input, shape index: {}]
  %s1 = inlined_call_operand.hbm [shape: bf16[32,512], index: 1, kind: input, shape index: {}]
  %s2 = inlined_call_operand.hbm [shape: f32[1,512], index: 2, kind: input, shape index: {}]
  %s3 = inlined_call_operand.hbm [shape: bf16[32,512], index: 3, kind: output, shape index: {}]
  %s4 = sld [smem:[#allocation0]]
  $region34: #{tpu_custom_call.1} parent=0
    _
  %s6 = ssub.s32 1, %s4
  %s7 = scalar_select 0, %s6, %s4
  $region1: #{tpu_custom_call.1} parent=0
    #allocation2 [shape = 'u8[8192]{0}', space=vmem, size = 0x2000, scoped, tag = 'input window, operand 0, single buffered']
    #allocation3 [shape = 's32[1]{0}', space=sflag, size = 0x4, scoped, tag = 'scoped memory for tpu_custom_call.1']
    #allocation4 [shape = 's32[1]{0}', space=sflag, size = 0x4, scoped, tag = 'scoped memory for tpu_custom_call.1']
    #allocation5 [shape = 'u8[32768]{0}', space=vmem, size = 0x8000, scoped, tag = 'input window, operand 1, single buffered']
    #allocation6 [shape = 's32[1]{0}', space=sflag, size = 0x4, scoped, tag = 'scoped memory for tpu_custom_call.1']
    #allocation7 [shape = 'u8[2048]{0}', space=vmem, size = 0x800, scoped, tag = 'input window, operand 2, single buffered']
    #allocation8 [shape = 'u8[32768]{0}', space=vmem, size = 0x8000, scoped, tag = 'output window, operand 0, single buffered']
    %8 = vsyncpa [#allocation3], 0
    %9 = vsyncpa [#allocation6], 0
    %10 = vsyncpa [#allocation4], 0
    // Predicated region
    $region2: #{tpu_custom_call.1} parent=1 // pred_check
      _
    $region3: #{tpu_custom_call.1} parent=1 // pred_check_branch
      %12 = sbr.rel (0) target = $region5
    $region4: #{tpu_custom_call.1} parent=1 // pred_region
      %14 = vsyncadd [#allocation3], 0
      %s15 = sshll.u32 %s0, 4
      %s16 = int_to_ptr.hbm [resolvable:$true] %s15
      %s17 = sshll.u32 [#allocation2], 4
      %s18 = int_to_ptr.vmem [resolvable:$true] %s17
      %23 = dma.hbm_to_vmem [thread:$0]  %s16, 256, %s18, [#allocation3], 64, 64, 4
    $region5: #{tpu_custom_call.1} parent=1 // pred_fallthru
      _
    // Predicated region
    $region6: #{tpu_custom_call.1} parent=1 // pred_check
      _
    $region7: #{tpu_custom_call.1} parent=1 // pred_check_branch
      %25 = sbr.rel (0) target = $region9
    $region8: #{tpu_custom_call.1} parent=1 // pred_region
      %27 = vsyncadd [#allocation6], 0
      %s28 = sshll.u32 %s1, 4
      %s29 = int_to_ptr.hbm [resolvable:$true] %s28
      %s30 = sshll.u32 [#allocation5], 4
      %s31 = int_to_ptr.vmem [resolvable:$true] %s30
      %36 = dma.hbm_to_vmem [thread:$0]  %s29, 1024, %s31, [#allocation6], 256, 256, 16
    $region9: #{tpu_custom_call.1} parent=1 // pred_fallthru
      _
    // Predicated region
    $region10: #{tpu_custom_call.1} parent=1 // pred_check
      _
    $region11: #{tpu_custom_call.1} parent=1 // pred_check_branch
      %38 = sbr.rel (0) target = $region13
    $region12: #{tpu_custom_call.1} parent=1 // pred_region
      %40 = vsyncadd [#allocation6], 0
      %s42 = sshll.u32 %s2, 4
      %s43 = int_to_ptr.hbm [resolvable:$true] %s42
      %s44 = sshll.u32 [#allocation7], 4
      %s45 = int_to_ptr.vmem [resolvable:$true] %s44
      %47 = dma.hbm_to_vmem [thread:$0]  %s43, 64, %s45, [#allocation6]
    $region13: #{tpu_custom_call.1} parent=1 // pred_fallthru
      _
    // Predicated region
    $region14: #{tpu_custom_call.1} parent=1 // pred_check
      _
    $region15: #{tpu_custom_call.1} parent=1 // pred_check_branch
      %49 = sbr.rel (0) target = $region17
    $region16: #{tpu_custom_call.1} parent=1 // pred_region
      %51 = dma.done [#allocation3], 256
    $region17: #{tpu_custom_call.1} parent=1 // pred_fallthru
      _
    // Predicated region
    $region18: #{tpu_custom_call.1} parent=1 // pred_check
      _
    $region19: #{tpu_custom_call.1} parent=1 // pred_check_branch
      %53 = sbr.rel (0) target = $region21
    $region20: #{tpu_custom_call.1} parent=1 // pred_region
      %55 = dma.done [#allocation6], 1024
    $region21: #{tpu_custom_call.1} parent=1 // pred_fallthru
      _
    // Predicated region
    $region22: #{tpu_custom_call.1} parent=1 // pred_check
      _
    $region23: #{tpu_custom_call.1} parent=1 // pred_check_branch
      %57 = sbr.rel (0) target = $region25
    $region24: #{tpu_custom_call.1} parent=1 // pred_region
      %59 = dma.done [#allocation6], 64
    $region25: #{tpu_custom_call.1} parent=1 // pred_fallthru
      _
    %v61 = vld [vmem:[#allocation2] sm:$0xf]
    %v62 = vld [vmem:[#allocation2 + $0x4] sm:$0xf]
    %v63 = vld [vmem:[#allocation2 + $0x8] sm:$0xf]
    %v64 = vld [vmem:[#allocation2 + $0xc] sm:$0xf]
    %v65 = vld [vmem:[#allocation5] sm:$0xff]
    %v66 = vld [vmem:[#allocation5 + $0x8] sm:$0xff]
    %v67 = vld [vmem:[#allocation5 + $0x10] sm:$0xff]
    %v68 = vld [vmem:[#allocation5 + $0x18] sm:$0xff]
    %v69 = vld [vmem:[#allocation5 + $0x20] sm:$0xff]
    %v70 = vld [vmem:[#allocation5 + $0x28] sm:$0xff]
    %v71 = vld [vmem:[#allocation5 + $0x30] sm:$0xff]
    %v72 = vld [vmem:[#allocation5 + $0x38] sm:$0xff]
    %v73 = vld [vmem:[#allocation7] sm:$0xf]
    %v75 = vperm.slane %v73, 0
    %v76 = vperm.slane %v73, 1
    %v77 = vperm.slane %v73, 2
    %v78 = vperm.slane %v73, 3
    %v87 = vunpack.c.l.b16 %v61
    %v88 = vunpack.c.l.b16 %v62
    %v89 = vunpack.c.l.b16 %v63
    %v90 = vunpack.c.l.b16 %v64
    %v91 = vpack.c.b16 %v88, %v87
    %v92 = vpack.c.b16 %v90, %v89
    %v101 = vunpack.c.l.b16 %v65
    %v102 = vunpack.c.h.b16 %v65
    %v103 = vunpack.c.l.b16 %v66
    %v104 = vunpack.c.h.b16 %v66
    %v105 = vunpack.c.l.b16 %v67
    %v106 = vunpack.c.h.b16 %v67
    %v107 = vunpack.c.l.b16 %v68
    %v108 = vunpack.c.h.b16 %v68
    %v109 = vunpack.c.l.b16 %v69
    %v110 = vunpack.c.h.b16 %v69
    %v111 = vunpack.c.l.b16 %v70
    %v112 = vunpack.c.h.b16 %v70
    %v113 = vunpack.c.l.b16 %v71
    %v114 = vunpack.c.h.b16 %v71
    %v115 = vunpack.c.l.b16 %v72
    %v116 = vunpack.c.h.b16 %v72
    %v117 = vpack.c.b16 %v105, %v101
    %v118 = vpack.c.b16 %v106, %v102
    %v119 = vpack.c.b16 %v107, %v103
    %v120 = vpack.c.b16 %v108, %v104
    %v121 = vpack.c.b16 %v113, %v109
    %v122 = vpack.c.b16 %v114, %v110
    %v123 = vpack.c.b16 %v115, %v111
    %v124 = vpack.c.b16 %v116, %v112
    %vm133 = vcmask 261120
    %v135 = vsel %vm133, %v91, 0
    %v138 = vsel %vm133, %v92, 0
    %140 = vmatpush.bf16.msra.mxu0 0
    %141 = vmatpush.bf16.msra.mxu0 0
    %142 = vmatpush.bf16.msra.mxu0 0
    %143 = vmatpush.bf16.msra.mxu0 0
    %144 = vmatpush.bf16.msra.mxu0 0
    %145 = vmatpush.bf16.msra.mxu0 0
    %146 = vmatpush.bf16.msra.mxu0 %v121
    %147 = vmatpush.bf16.msra.mxu0 %v117
    %148 = vmatmul.bf16.gmra.mxu0 %v135
    %v149 = vpop.f32.mrf.mxu0
    %v150 = vadd.f32 %v75, %v149
    %v151 = vpop.f32.mrf.mxu0
    %v152 = vadd.f32 %v75, %v151
    %153 = vmatmul.bf16.gmra.mxu0 %v138
    %v154 = vpop.f32.mrf.mxu0
    %v155 = vadd.f32 %v75, %v154
    %v156 = vpop.f32.mrf.mxu0
    %v157 = vadd.f32 %v75, %v156
    %158 = vdwg.mxu0
    %159 = vmatpush.bf16.msra.mxu0 0
    %160 = vmatpush.bf16.msra.mxu0 0
    %161 = vmatpush.bf16.msra.mxu0 0
    %162 = vmatpush.bf16.msra.mxu0 0
    %163 = vmatpush.bf16.msra.mxu0 0
    %164 = vmatpush.bf16.msra.mxu0 0
    %165 = vmatpush.bf16.msra.mxu0 %v122
    %166 = vmatpush.bf16.msra.mxu0 %v118
    %167 = vmatmul.bf16.gmra.mxu0 %v135
    %v168 = vpop.f32.mrf.mxu0
    %v169 = vadd.f32 %v76, %v168
    %v170 = vpop.f32.mrf.mxu0
    %v171 = vadd.f32 %v76, %v170
    %172 = vmatmul.bf16.gmra.mxu0 %v138
    %v173 = vpop.f32.mrf.mxu0
    %v174 = vadd.f32 %v76, %v173
    %v175 = vpop.f32.mrf.mxu0
    %v176 = vadd.f32 %v76, %v175
    %177 = vdwg.mxu0
    %178 = vmatpush.bf16.msra.mxu0 0
    %179 = vmatpush.bf16.msra.mxu0 0
    %180 = vmatpush.bf16.msra.mxu0 0
    %181 = vmatpush.bf16.msra.mxu0 0
    %182 = vmatpush.bf16.msra.mxu0 0
    %183 = vmatpush.bf16.msra.mxu0 0
    %184 = vmatpush.bf16.msra.mxu0 %v123
    %185 = vmatpush.bf16.msra.mxu0 %v119
    %186 = vmatmul.bf16.gmra.mxu0 %v135
    %v187 = vpop.f32.mrf.mxu0
    %v188 = vadd.f32 %v77, %v187
    %v189 = vpop.f32.mrf.mxu0
    %v190 = vadd.f32 %v77, %v189
    %191 = vmatmul.bf16.gmra.mxu0 %v138
    %v192 = vpop.f32.mrf.mxu0
    %v193 = vadd.f32 %v77, %v192
    %v194 = vpop.f32.mrf.mxu0
    %v195 = vadd.f32 %v77, %v194
    %196 = vdwg.mxu0
    %197 = vmatpush.bf16.msra.mxu0 0
    %198 = vmatpush.bf16.msra.mxu0 0
    %199 = vmatpush.bf16.msra.mxu0 0
    %200 = vmatpush.bf16.msra.mxu0 0
    %201 = vmatpush.bf16.msra.mxu0 0
    %202 = vmatpush.bf16.msra.mxu0 0
    %203 = vmatpush.bf16.msra.mxu0 %v124
    %204 = vmatpush.bf16.msra.mxu0 %v120
    %205 = vmatmul.bf16.gmra.mxu0 %v135
    %v206 = vpop.f32.mrf.mxu0
    %v207 = vadd.f32 %v78, %v206
    %v208 = vpop.f32.mrf.mxu0
    %v209 = vadd.f32 %v78, %v208
    %210 = vmatmul.bf16.gmra.mxu0 %v138
    %v211 = vpop.f32.mrf.mxu0
    %v212 = vadd.f32 %v78, %v211
    %v213 = vpop.f32.mrf.mxu0
    %v214 = vadd.f32 %v78, %v213
    %215 = vdwg.mxu0
    %v216 = vpack.c.bf16 %v169, %v150
    %v217 = vpack.c.bf16 %v207, %v188
    %v218 = vpack.c.bf16 %v171, %v152
    %v219 = vpack.c.bf16 %v209, %v190
    %v220 = vpack.c.bf16 %v174, %v155
    %v221 = vpack.c.bf16 %v212, %v193
    %v222 = vpack.c.bf16 %v176, %v157
    %v223 = vpack.c.bf16 %v214, %v195
    %224 = vst [vmem:[#allocation8] sm:$0xff] %v216
    %225 = vst [vmem:[#allocation8 + $0x8] sm:$0xff] %v217
    %226 = vst [vmem:[#allocation8 + $0x10] sm:$0xff] %v218
    %227 = vst [vmem:[#allocation8 + $0x18] sm:$0xff] %v219
    %228 = vst [vmem:[#allocation8 + $0x20] sm:$0xff] %v220
    %229 = vst [vmem:[#allocation8 + $0x28] sm:$0xff] %v221
    %230 = vst [vmem:[#allocation8 + $0x30] sm:$0xff] %v222
    %231 = vst [vmem:[#allocation8 + $0x38] sm:$0xff] %v223
    // Predicated region
    $region26: #{tpu_custom_call.1} parent=1 // pred_check
      _
    $region27: #{tpu_custom_call.1} parent=1 // pred_check_branch
      %233 = sbr.rel (0) target = $region29
    $region28: #{tpu_custom_call.1} parent=1 // pred_region
      %235 = vsyncadd [#allocation4], 0
      %s236 = sshll.u32 [#allocation8], 4
      %s237 = int_to_ptr.vmem [resolvable:$true] %s236
      %s238 = sshll.u32 %s3, 4
      %s239 = int_to_ptr.hbm [resolvable:$true] %s238
      %244 = dma.vmem_to_hbm [thread:$0]  %s237, 1024, %s239, [#allocation4], 256, 256, 16
    $region29: #{tpu_custom_call.1} parent=1 // pred_fallthru
      _
    // Predicated region
    $region30: #{tpu_custom_call.1} parent=1 // pred_check
      _
    $region31: #{tpu_custom_call.1} parent=1 // pred_check_branch
      %246 = sbr.rel (0) target = $region33
    $region32: #{tpu_custom_call.1} parent=1 // pred_region
      %248 = dma.done [#allocation4], 1024
    $region33: #{tpu_custom_call.1} parent=1 // pred_fallthru
      _
    %249 = vsyncpa [#allocation3], 1
    %250 = vsyncpa [#allocation6], 1
    %251 = vsyncpa [#allocation4], 1

</llo_original>
